<compile_context>
chip_gen: v7x
topology: tpu7x:2x2x1
jax: 0.10.0
libtpu: 0.0.40
codegen_flags: <defaults>
</compile_context>

<pallas_src>
import functools

import jax
import jax.numpy as jnp
from jax.experimental import pallas as pl
from jax.experimental.pallas import tpu as pltpu


def _interaction_kernel(x_ref, y_ref, wbil_ref, wx_ref, wy_ref, out_ref, *,
                        output_dim, y_dim):
    x = x_ref[...]                                   # (TN, x_dim)  input dtype (f32/bf16)
    y = y_ref[...]                                   # (TN, y_dim)  input dtype
    y32 = y.astype(jnp.float32)                      # elementwise stage stays f32 (v5e-safe)

    # One fused MXU matmul covering every head and every output dim:
    #   t[:, o*y_dim + g*hy + q] = sum_i x[:, g*hx+i] * w4[g, i, o, q]
    t = jnp.dot(x, wbil_ref[...], preferred_element_type=jnp.float32)   # (TN, od*y_dim) f32

    if output_dim == 1:
        p = t * y32                                                      # (TN, y_dim) f32
        ones_bd = jnp.ones((1, y_dim), jnp.float32)                      # row-sum reducer
    else:
        p = t * jnp.tile(y32, (1, output_dim))                           # (TN, od*y_dim) f32
        # Block-diagonal ones (od, od*y_dim): row o is 1 over cols [o*y_dim, (o+1)*y_dim).
        row = jax.lax.broadcasted_iota(jnp.int32, (output_dim, output_dim * y_dim), 0)
        col = jax.lax.broadcasted_iota(jnp.int32, (output_dim, output_dim * y_dim), 1)
        ones_bd = (col // y_dim == row).astype(jnp.float32)

    # Lane-dense reductions via the QK^T dot pattern (contract both minor dims) -> (od, TN).
    dn = (((1,), (1,)), ((), ()))
    bil = jax.lax.dot_general(ones_bd, p, dn, preferred_element_type=jnp.float32)
    linx = jax.lax.dot_general(wx_ref[...], x, dn, preferred_element_type=jnp.float32)
    liny = jax.lax.dot_general(wy_ref[...], y, dn, preferred_element_type=jnp.float32)

    out_ref[...] = (bil + linx + liny)[None].astype(out_ref.dtype)       # (1, od, TN)


def interaction_aggregation(x, y, params, *, num_heads, output_dim, tile_n=8192):
    """x: (B, item_num, clip_num, x_dim), y: (..., y_dim) -> (B, item_num, clip_num[, od])."""
    B, I, C, x_dim = x.shape
    y_dim = y.shape[-1]
    hx = x_dim // num_heads
    hy = y_dim // num_heads
    N = B * I * C
    dt = x.dtype

    def rup(v, m):
        return -(-int(v) // m) * m

    # Row tile: multiple of 128 so output row blocks stay lane-dense and the x/y sublane
    # dims satisfy (8,128)/(16,128) tiling.  For small N use a single full-array block.
    tile_n = max(128, (int(tile_n) // 128) * 128)
    if N <= tile_n:
        tile_n = N
    num_tiles = pl.cdiv(N, tile_n)

    # NOTE: no jnp.pad (saves an extra HBM read+write of both inputs when N % tile_n != 0).
    # Pallas handles the partial final input block; its undefined tail rows only feed
    # output rows that are sliced off below.  Keep the invariant: no cross-row reductions.
    x2 = x.reshape(N, x_dim)
    y2 = y.reshape(N, y_dim)

    # Block-diagonal fused bilinear weight, preserving PyTorch's exact view order:
    #   w_xy (H*hx*hy, od) -> (H, hx, od, hy); wbil[h*hx+i, o*y_dim + g*hy + q] = w4[h,i,o,q]*delta_hg
    w4 = params["w_xy"].reshape(num_heads, hx, output_dim, hy).astype(jnp.float32)
    eye = jnp.eye(num_heads, dtype=jnp.float32)
    wbil = jnp.einsum("hioq,hg->hiogq", w4, eye).reshape(x_dim, output_dim * y_dim)

    # MXU operands cast to input dtype (bf16 weights when inputs are bf16); f32 accumulation.
    wbil = wbil.astype(dt)
    wx_rows = params["wx"].astype(dt)                 # (od, x_dim)
    wy_rows = params["wy"].astype(dt)                 # (od, y_dim)
    bias = (params["bx"] + params["by"]).reshape(1, output_dim).astype(jnp.float32)

    # VMEM budget with 128-lane / 8-sublane padding in mind (feature dims < 128 lanes).
    in_isz = jnp.dtype(dt).itemsize
    xf, yf = rup(x_dim, 128), rup(y_dim, 128)
    odp = rup(output_dim, 8)
    per_step = tile_n * (xf + yf) * in_isz + odp * rup(tile_n, 128) * in_isz
    wbytes = int((wbil.size + wx_rows.size + wy_rows.size) * in_isz)
    vmem_limit = 2 * per_step + 2 * wbytes + (4 << 20)          # double-buffered + margin
    vmem_limit = int(min(max(vmem_limit, 16 << 20), 48 << 20))  # safe on v5e/v6e/v7x

    flops = 2 * N * output_dim * (x_dim * y_dim + x_dim + 2 * y_dim)
    bytes_accessed = N * (x_dim + y_dim) * in_isz + N * output_dim * in_isz + wbytes

    kernel = functools.partial(_interaction_kernel, output_dim=output_dim, y_dim=y_dim)

    out3 = pl.pallas_call(
        kernel,
        out_shape=jax.ShapeDtypeStruct((num_tiles, output_dim, tile_n), dt),
        grid_spec=pltpu.PrefetchScalarGridSpec(
            num_scalar_prefetch=0,
            grid=(num_tiles,),
            in_specs=[
                pl.BlockSpec((tile_n, x_dim), lambda i: (i, 0)),
                pl.BlockSpec((tile_n, y_dim), lambda i: (i, 0)),
                pl.BlockSpec((x_dim, output_dim * y_dim), lambda i: (0, 0)),   # resident
                pl.BlockSpec((output_dim, x_dim), lambda i: (0, 0)),           # resident
                pl.BlockSpec((output_dim, y_dim), lambda i: (0, 0)),           # resident
            ],
            out_specs=pl.BlockSpec((1, output_dim, tile_n), lambda i: (i, 0, 0)),
        ),
        compiler_params=pltpu.CompilerParams(
            dimension_semantics=("parallel",),
            vmem_limit_bytes=vmem_limit,
        ),
        cost_estimate=pl.CostEstimate(flops=int(flops), transcendentals=0,
                                      bytes_accessed=int(bytes_accessed)),
    )(x2, y2, wbil, wx_rows, wy_rows)

    # Epilogue: lane-dense (tiles, od, tile_n) -> (N, od); drop tail rows; add bias here
    # (cheaper than a padded (1, od) VMEM block + extra pipeline stage inside the kernel).
    out = jnp.transpose(out3, (0, 2, 1)).reshape(num_tiles * tile_n, output_dim)[:N]
    out = (out.astype(jnp.float32) + bias).astype(dt)
    out = out.reshape(B, I, C, output_dim)
    if output_dim == 1:
        out = out[..., 0]                             # torch .squeeze(-1)
    return out


def reference(x, y, params, *, num_heads, output_dim):
    """Pure-JAX transcription of the PyTorch forward for verification."""
    B, I, C, x_dim = x.shape
    y_dim = y.shape[-1]
    hx = x_dim // num_heads
    hy = y_dim // num_heads
    N = B * I * C

    out = (jnp.einsum("bicd,od->bico", x, params["wx"]) + params["bx"]
           + jnp.einsum("bicd,od->bico", y, params["wy"]) + params["by"])

    head_x = x.reshape(N, num_heads, hx)
    head_y = y.reshape(N, num_heads, hy)
    w_view = params["w_xy"].reshape(num_heads, hx, hy * output_dim)
    a = jnp.einsum("nhi,him->nhm", head_x, w_view)           # (N, H, hy*od)
    a = a.reshape(N, num_heads, output_dim, hy)              # torch .view reinterpretation
    xy = jnp.einsum("nhoq,nhq->nho", a, head_y)              # (N, H, od)
    xy = xy.sum(axis=1).reshape(B, I, C, output_dim)
    out = out + xy
    if output_dim == 1:
        out = out[..., 0]
    return out


if __name__ == "__main__":
    def make_params(key, x_dim, y_dim, num_heads, output_dim):
        hx, hy = x_dim // num_heads, y_dim // num_heads
        k1, k2, k3 = jax.random.split(key, 3)
        xavier_std = (2.0 / (num_heads * hx * hy + output_dim)) ** 0.5
        return {
            "wx": 0.1 * jax.random.normal(k1, (output_dim, x_dim), jnp.float32),
            "bx": jnp.linspace(-0.02, 0.03, output_dim, dtype=jnp.float32),
            "wy": 0.1 * jax.random.normal(k2, (output_dim, y_dim), jnp.float32),
            "by": jnp.linspace(0.01, -0.04, output_dim, dtype=jnp.float32),
            "w_xy": xavier_std * jax.random.normal(
                k3, (num_heads * hx * hy, output_dim), jnp.float32),
        }

    # Config 1: module defaults (output_dim=1) -> torch .squeeze(-1) path.
    B, I, C, x_dim, y_dim, H, OD = 2, 3, 4, 32, 16, 2, 1
    kx, ky, kp = jax.random.split(jax.random.PRNGKey(0), 3)
    x = jax.random.normal(kx, (B, I, C, x_dim), jnp.float32)
    y = jax.random.normal(ky, (B, I, C, y_dim), jnp.float32)
    params = make_params(kp, x_dim, y_dim, H, OD)

    ref = reference(x, y, params, num_heads=H, output_dim=OD)
    out = jax.block_until_ready(
        interaction_aggregation(x, y, params, num_heads=H, output_dim=OD))
    assert out.shape == (B, I, C), out.shape
    assert jnp.allclose(out, ref, atol=2e-3, rtol=2e-3), float(jnp.max(jnp.abs(out - ref)))

    # bf16 inputs (best roofline lever on v5e): f32 accumulation in-kernel, looser tolerance.
    out_bf16 = jax.block_until_ready(interaction_aggregation(
        x.astype(jnp.bfloat16), y.astype(jnp.bfloat16), params, num_heads=H, output_dim=OD))
    assert out_bf16.shape == (B, I, C), out_bf16.shape
    assert jnp.allclose(out_bf16.astype(jnp.float32), ref, atol=1e-1, rtol=1e-1), (
        float(jnp.max(jnp.abs(out_bf16.astype(jnp.float32) - ref))))

    # Config 2: output_dim>1 / num_heads>1 exercises the PyTorch view-order reinterpretation,
    # and N=138 with tile_n=128 exercises the no-pad partial-final-block path.
    B2, I2, C2, xd2, yd2, H2, OD2 = 2, 3, 23, 32, 16, 4, 3
    kx2, ky2, kp2 = jax.random.split(jax.random.PRNGKey(1), 3)
    xb = jax.random.normal(kx2, (B2, I2, C2, xd2), jnp.float32)
    yb = jax.random.normal(ky2, (B2, I2, C2, yd2), jnp.float32)
    params2 = make_params(kp2, xd2, yd2, H2, OD2)
    ref2 = reference(xb, yb, params2, num_heads=H2, output_dim=OD2)
    out2 = jax.block_until_ready(interaction_aggregation(
        xb, yb, params2, num_heads=H2, output_dim=OD2, tile_n=128))
    assert out2.shape == (B2, I2, C2, OD2), out2.shape
    assert jnp.allclose(out2, ref2, atol=2e-3, rtol=2e-3), float(jnp.max(jnp.abs(out2 - ref2)))

    print("KERNEL_OK")
</pallas_src>

<mosaic_0001>
module attributes {stable_mosaic.version = 11 : i64} {
  func.func @_interaction_kernel(%arg0: i32, %arg1: memref<24x32xf32, #tpu.memory_space<vmem>>, %arg2: memref<24x16xf32, #tpu.memory_space<vmem>>, %arg3: memref<32x16xf32, #tpu.memory_space<vmem>>, %arg4: memref<1x32xf32, #tpu.memory_space<vmem>>, %arg5: memref<1x16xf32, #tpu.memory_space<vmem>>, %arg6: memref<1x1x24xf32, #tpu.memory_space<vmem>>) attributes {dimension_semantics = [#tpu.dimension_semantics<parallel>], iteration_bounds = array<i64: 1>, scalar_prefetch = 0 : i64, scratch_operands = 0 : i64, tpu.core_type = #tpu.core_type<tc>, window_params = [{transform_indices = @transform_0, window_bounds = array<i64: 24, 32>}, {transform_indices = @transform_1, window_bounds = array<i64: 24, 16>}, {pipeline_mode = #tpu.pipeline_mode<synchronous>, transform_indices = @transform_2, window_bounds = array<i64: 32, 16>}, {pipeline_mode = #tpu.pipeline_mode<synchronous>, transform_indices = @transform_3, window_bounds = array<i64: 1, 32>}, {pipeline_mode = #tpu.pipeline_mode<synchronous>, transform_indices = @transform_4, window_bounds = array<i64: 1, 16>}, {transform_indices = @transform_5, window_bounds = array<i64: 1, 1, 24>}]} {
    %c0 = arith.constant 0 : index
    %c0_0 = arith.constant 0 : index
    %0 = vector.load %arg1[%c0, %c0_0] : memref<24x32xf32, #tpu.memory_space<vmem>>, vector<24x32xf32>
    %c0_1 = arith.constant 0 : index
    %c0_2 = arith.constant 0 : index
    %1 = vector.load %arg2[%c0_1, %c0_2] : memref<24x16xf32, #tpu.memory_space<vmem>>, vector<24x16xf32>
    %c0_3 = arith.constant 0 : index
    %c0_4 = arith.constant 0 : index
    %2 = vector.load %arg3[%c0_3, %c0_4] : memref<32x16xf32, #tpu.memory_space<vmem>>, vector<32x16xf32>
    %cst = arith.constant dense<0.000000e+00> : vector<24x16xf32>
    %3 = tpu.matmul %0, %2, %cst {dimension_numbers = #tpu.dot_dimension_numbers<[1], [0], [0], [1], [0, 0, 1, 1], [], []>} : vector<24x32xf32>, vector<32x16xf32>, vector<24x16xf32> -> vector<24x16xf32>
    %4 = arith.mulf %3, %1 : vector<24x16xf32>
    %cst_5 = arith.constant 1.000000e+00 : f32
    %5 = vector.broadcast %cst_5 : f32 to vector<1x16xf32>
    %cst_6 = arith.constant dense<0.000000e+00> : vector<1x24xf32>
    %6 = tpu.matmul %5, %4, %cst_6 {dimension_numbers = #tpu.dot_dimension_numbers<[1], [1], [0], [0], [0, 0, 1, 0], [], []>} : vector<1x16xf32>, vector<24x16xf32>, vector<1x24xf32> -> vector<1x24xf32>
    %c0_7 = arith.constant 0 : index
    %c0_8 = arith.constant 0 : index
    %7 = vector.load %arg4[%c0_7, %c0_8] : memref<1x32xf32, #tpu.memory_space<vmem>>, vector<1x32xf32>
    %cst_9 = arith.constant dense<0.000000e+00> : vector<1x24xf32>
    %8 = tpu.matmul %7, %0, %cst_9 {dimension_numbers = #tpu.dot_dimension_numbers<[1], [1], [0], [0], [0, 0, 1, 0], [], []>} : vector<1x32xf32>, vector<24x32xf32>, vector<1x24xf32> -> vector<1x24xf32>
    %c0_10 = arith.constant 0 : index
    %c0_11 = arith.constant 0 : index
    %9 = vector.load %arg5[%c0_10, %c0_11] : memref<1x16xf32, #tpu.memory_space<vmem>>, vector<1x16xf32>
    %cst_12 = arith.constant dense<0.000000e+00> : vector<1x24xf32>
    %10 = tpu.matmul %9, %1, %cst_12 {dimension_numbers = #tpu.dot_dimension_numbers<[1], [1], [0], [0], [0, 0, 1, 0], [], []>} : vector<1x16xf32>, vector<24x16xf32>, vector<1x24xf32> -> vector<1x24xf32>
    %11 = arith.addf %6, %8 : vector<1x24xf32>
    %12 = arith.addf %11, %10 : vector<1x24xf32>
    %13 = vector.shape_cast %12 : vector<1x24xf32> to vector<1x1x24xf32>
    %c0_13 = arith.constant 0 : index
    %c0_14 = arith.constant 0 : index
    %c0_15 = arith.constant 0 : index
    %14 = vector.load %arg6[%c0_13, %c0_14, %c0_15] : memref<1x1x24xf32, #tpu.memory_space<vmem>>, vector<1x1x24xf32>
    tpu.vector_store %arg6[%c0_13, %c0_14, %c0_15], %13 {strides = array<i32>} : memref<1x1x24xf32, #tpu.memory_space<vmem>>, vector<1x1x24xf32>,
    return
  }
  func.func @transform_0(%arg0: i32) -> (i32, i32) {
    %c0_i32 = arith.constant 0 : i32
    %c0_i32_0 = arith.constant 0 : i32
    return %arg0, %c0_i32 : i32, i32
  }
  func.func @transform_1(%arg0: i32) -> (i32, i32) {
    %c0_i32 = arith.constant 0 : i32
    %c0_i32_0 = arith.constant 0 : i32
    return %arg0, %c0_i32 : i32, i32
  }
  func.func @transform_2(%arg0: i32) -> (i32, i32) {
    %c0_i32 = arith.constant 0 : i32
    %c0_i32_0 = arith.constant 0 : i32
    %c0_i32_1 = arith.constant 0 : i32
    return %c0_i32, %c0_i32_0 : i32, i32
  }
  func.func @transform_3(%arg0: i32) -> (i32, i32) {
    %c0_i32 = arith.constant 0 : i32
    %c0_i32_0 = arith.constant 0 : i32
    %c0_i32_1 = arith.constant 0 : i32
    return %c0_i32, %c0_i32_0 : i32, i32
  }
  func.func @transform_4(%arg0: i32) -> (i32, i32) {
    %c0_i32 = arith.constant 0 : i32
    %c0_i32_0 = arith.constant 0 : i32
    %c0_i32_1 = arith.constant 0 : i32
    return %c0_i32, %c0_i32_0 : i32, i32
  }
  func.func @transform_5(%arg0: i32) -> (i32, i32, i32) {
    %c0_i32 = arith.constant 0 : i32
    %c0_i32_0 = arith.constant 0 : i32
    %c0_i32_1 = arith.constant 0 : i32
    return %arg0, %c0_i32, %c0_i32_0 : i32, i32, i32
  }
}

</mosaic_0001>

<llo_original>
// kernel: tpu_custom_call.1
$region0: #{tpu_custom_call.1}
  #allocation0 [shape = 'u32[]', space=smem, size = 0x4, offset = 0x4, fixed_abs, tag = 'smem constant byte address 0x4 - core index']
  #allocation1 [shape = 'u32[144,128]{1,0:T(1,128)}', space=vmem, size = 0x12000, scoped, tag = 'internal scratch']
  %s0 = inlined_call_operand.vmem [shape: f32[24,32], index: 0, kind: input, shape index: {}]
  %s1 = inlined_call_operand.vmem [shape: f32[24,16], index: 1, kind: input, shape index: {}]
  %s2 = inlined_call_operand.vmem [shape: f32[32,16], index: 2, kind: input, shape index: {}]
  %s3 = inlined_call_operand.vmem [shape: f32[1,32], index: 3, kind: input, shape index: {}]
  %s4 = inlined_call_operand.vmem [shape: f32[1,16], index: 4, kind: input, shape index: {}]
  %s5 = inlined_call_operand.hbm [shape: f32[1,1,24], index: 5, kind: output, shape index: {}]
  %s6 = sld [smem:[#allocation0]]
  $region30: #{tpu_custom_call.1} parent=0
    _
  %s8 = ssub.s32 1, %s6
  %s9 = scalar_select 0, %s8, %s6
  $region1: #{tpu_custom_call.1} parent=0
    #allocation2 [shape = 'u8[512]{0}', space=vmem, size = 0x400, scoped, tag = 'output window, operand 0, single buffered']
    #allocation3 [shape = 's32[1]{0}', space=sflag, size = 0x4, scoped, tag = 'scoped memory for tpu_custom_call.1']
    %10 = vsyncpa [#allocation3], 0
    // Predicated region
    $region2: #{tpu_custom_call.1} parent=1 // pred_check
      _
    $region3: #{tpu_custom_call.1} parent=1 // pred_check_branch
      %12 = sbr.rel (0) target = $region5
    $region4: #{tpu_custom_call.1} parent=1 // pred_region
      _
    $region5: #{tpu_custom_call.1} parent=1 // pred_fallthru
      _
    // Predicated region
    $region6: #{tpu_custom_call.1} parent=1 // pred_check
      _
    $region7: #{tpu_custom_call.1} parent=1 // pred_check_branch
      %14 = sbr.rel (0) target = $region9
    $region8: #{tpu_custom_call.1} parent=1 // pred_region
      _
    $region9: #{tpu_custom_call.1} parent=1 // pred_fallthru
      _
    // Predicated region
    $region10: #{tpu_custom_call.1} parent=1 // pred_check
      _
    $region11: #{tpu_custom_call.1} parent=1 // pred_check_branch
      %16 = sbr.rel (0) target = $region13
    $region12: #{tpu_custom_call.1} parent=1 // pred_region
      _
    $region13: #{tpu_custom_call.1} parent=1 // pred_fallthru
      _
    // Predicated region
    $region14: #{tpu_custom_call.1} parent=1 // pred_check
      _
    $region15: #{tpu_custom_call.1} parent=1 // pred_check_branch
      %18 = sbr.rel (0) target = $region17
    $region16: #{tpu_custom_call.1} parent=1 // pred_region
      _
    $region17: #{tpu_custom_call.1} parent=1 // pred_fallthru
      _
    // Predicated region
    $region18: #{tpu_custom_call.1} parent=1 // pred_check
      _
    $region19: #{tpu_custom_call.1} parent=1 // pred_check_branch
      %20 = sbr.rel (0) target = $region21
    $region20: #{tpu_custom_call.1} parent=1 // pred_region
      _
    $region21: #{tpu_custom_call.1} parent=1 // pred_fallthru
      _
    %v21 = vld [vmem:[%s0] sm:$0xff]
    %v22 = vld [vmem:[%s0 + $0x8] sm:$0xff]
    %v23 = vld [vmem:[%s0 + $0x10] sm:$0xff]
    %v24 = vld [vmem:[%s1] sm:$0xff]
    %v25 = vld [vmem:[%s1 + $0x8] sm:$0xff]
    %v26 = vld [vmem:[%s1 + $0x10] sm:$0xff]
    %v27 = vld [vmem:[%s2] sm:$0xff]
    %v28 = vld [vmem:[%s2 + $0x8] sm:$0xff]
    %v29 = vld [vmem:[%s2 + $0x10] sm:$0xff]
    %v30 = vld [vmem:[%s2 + $0x18] sm:$0xff]
    %vm31 = vcmask 261120
    %v33 = vsel %vm31, %v21, 0
    %v36 = vsel %vm31, %v22, 0
    %v39 = vsel %vm31, %v23, 0
    %41 = vmatprep.subr.mxu0 0.0
    %42 = vmatpush1.msra.mxu0 %v27
    %43 = vmatprep.subr.mxu0 0.0
    %44 = vmatpush1.msra.mxu0 %v28
    %45 = vmatprep.subr.mxu0 0.0
    %46 = vmatpush1.msra.mxu0 %v29
    %47 = vmatprep.subr.mxu0 0.0
    %48 = vmatpush1.msra.mxu0 %v30
    %49 = vmatprep.subr.mxu0 0.0
    %50 = vmatpush1.msra.mxu0 0.0
    %51 = vmatprep.subr.mxu0 0.0
    %52 = vmatpush1.msra.mxu0 0.0
    %53 = vmatprep.subr.mxu0 0.0
    %54 = vmatpush1.msra.mxu0 0.0
    %55 = vmatprep.subr.mxu0 0.0
    %56 = vmatpush1.msra.mxu0 0.0
    %57 = vmatprep.subr.mxu0 0.0
    %58 = vmatpush1.msra.mxu0 0.0
    %59 = vmatprep.subr.mxu0 0.0
    %60 = vmatpush1.msra.mxu0 0.0
    %61 = vmatprep.subr.mxu0 0.0
    %62 = vmatpush1.msra.mxu0 0.0
    %63 = vmatprep.subr.mxu0 0.0
    %64 = vmatpush1.msra.mxu0 0.0
    %65 = vmatprep.subr.mxu0 0.0
    %66 = vmatpush1.msra.mxu0 0.0
    %67 = vmatprep.subr.mxu0 0.0
    %68 = vmatpush1.msra.mxu0 0.0
    %69 = vmatprep.subr.mxu0 0.0
    %70 = vmatpush1.msra.mxu0 0.0
    %71 = vmatprep.subr.mxu0 0.0
    %72 = vmatpush1.msra.mxu0 0.0
    %73 = vmatprep.subr.mxu0 0.0
    %74 = vmatpush1.msra.mxu0 0.0
    %75 = vmatprep.subr.mxu0 0.0
    %76 = vmatpush1.msra.mxu0 0.0
    %77 = vmatprep.subr.mxu0 0.0
    %78 = vmatpush1.msra.mxu0 0.0
    %79 = vmatprep.subr.mxu0 0.0
    %80 = vmatpush1.msra.mxu0 0.0
    %81 = vmatprep.subr.mxu0 0.0
    %82 = vmatpush1.msra.mxu0 0.0
    %83 = vmatprep.subr.mxu0 0.0
    %84 = vmatpush1.msra.mxu0 0.0
    %85 = vmatprep.subr.mxu0 0.0
    %86 = vmatpush1.msra.mxu0 0.0
    %87 = vmatprep.subr.mxu0 0.0
    %88 = vmatpush1.msra.mxu0 0.0
    %89 = vmatprep.subr.mxu0 0.0
    %90 = vmatpush1.msra.mxu0 0.0
    %91 = vmatprep.subr.mxu0 0.0
    %92 = vmatpush1.msra.mxu0 0.0
    %93 = vmatprep.subr.mxu0 0.0
    %94 = vmatpush1.msra.mxu0 0.0
    %95 = vmatprep.subr.mxu0 0.0
    %96 = vmatpush1.msra.mxu0 0.0
    %97 = vmatprep.subr.mxu0 0.0
    %98 = vmatpush1.msra.mxu0 0.0
    %99 = vmatprep.subr.mxu0 0.0
    %100 = vmatpush1.msra.mxu0 0.0
    %101 = vmatprep.subr.mxu0 0.0
    %102 = vmatpush1.msra.mxu0 0.0
    %103 = vmatprep.subr.mxu0 0.0
    %104 = vmatpush1.msra.mxu0 0.0
    %105 = vmatprep.mubr.f32.mxu0 0.0
    %106 = vmatmul.mubr.f32.gmra.mrb[0].mxu0 %v33
    %v107 = vpop.f32.mrb[0].mxu0
    %v108 = vadd.f32 0.0, %v107
    %v109 = vpop.f32.mrb[0].mxu0
    %110 = vmatprep.mubr.f32.mxu0 0.0
    %111 = vmatmul.mubr.f32.gmra.mrb[0].mxu0 %v36
    %v112 = vpop.f32.mrb[0].mxu0
    %v113 = vadd.f32 0.0, %v112
    %v114 = vpop.f32.mrb[0].mxu0
    %115 = vmatprep.mubr.f32.mxu0 0.0
    %116 = vmatmul.mubr.f32.gmra.mrb[0].mxu0 %v39
    %v117 = vpop.f32.mrb[0].mxu0
    %v118 = vadd.f32 0.0, %v117
    %v119 = vpop.f32.mrb[0].mxu0
    %120 = vdwg.mxu0
    %v121 = vmul.f32 %v108, %v24
    %v122 = vmul.f32 %v113, %v25
    %v123 = vmul.f32 %v118, %v26
    %v124 = vld [vmem:[%s3] sm:$0x1]
    %v126 = vsel %vm31, %v124, 0
    %128 = vmatprep.subr.mxu0 0.0
    %129 = vmatpush1.xpose.msra.mxu0 %v33
    %130 = vmatprep.subr.mxu0 0.0
    %131 = vmatpush1.xpose.msra.mxu0 %v36
    %132 = vmatprep.subr.mxu0 0.0
    %133 = vmatpush1.xpose.msra.mxu0 %v39
    %134 = vmatprep.subr.mxu0 0.0
    %135 = vmatpush1.xpose.msra.mxu0 0.0
    %136 = vmatprep.subr.mxu0 0.0
    %137 = vmatpush1.xpose.msra.mxu0 0.0
    %138 = vmatprep.subr.mxu0 0.0
    %139 = vmatpush1.xpose.msra.mxu0 0.0
    %140 = vmatprep.subr.mxu0 0.0
    %141 = vmatpush1.xpose.msra.mxu0 0.0
    %142 = vmatprep.subr.mxu0 0.0
    %143 = vmatpush1.xpose.msra.mxu0 0.0
    %144 = vmatprep.subr.mxu0 0.0
    %145 = vmatpush1.xpose.msra.mxu0 0.0
    %146 = vmatprep.subr.mxu0 0.0
    %147 = vmatpush1.xpose.msra.mxu0 0.0
    %148 = vmatprep.subr.mxu0 0.0
    %149 = vmatpush1.xpose.msra.mxu0 0.0
    %150 = vmatprep.subr.mxu0 0.0
    %151 = vmatpush1.xpose.msra.mxu0 0.0
    %152 = vmatprep.subr.mxu0 0.0
    %153 = vmatpush1.xpose.msra.mxu0 0.0
    %154 = vmatprep.subr.mxu0 0.0
    %155 = vmatpush1.xpose.msra.mxu0 0.0
    %156 = vmatprep.subr.mxu0 0.0
    %157 = vmatpush1.xpose.msra.mxu0 0.0
    %158 = vmatprep.subr.mxu0 0.0
    %159 = vmatpush1.xpose.msra.mxu0 0.0
    %160 = vmatprep.subr.mxu0 0.0
    %161 = vmatpush1.xpose.msra.mxu0 0.0
    %162 = vmatprep.subr.mxu0 0.0
    %163 = vmatpush1.xpose.msra.mxu0 0.0
    %164 = vmatprep.subr.mxu0 0.0
    %165 = vmatpush1.xpose.msra.mxu0 0.0
    %166 = vmatprep.subr.mxu0 0.0
    %167 = vmatpush1.xpose.msra.mxu0 0.0
    %168 = vmatprep.subr.mxu0 0.0
    %169 = vmatpush1.xpose.msra.mxu0 0.0
    %170 = vmatprep.subr.mxu0 0.0
    %171 = vmatpush1.xpose.msra.mxu0 0.0
    %172 = vmatprep.subr.mxu0 0.0
    %173 = vmatpush1.xpose.msra.mxu0 0.0
    %174 = vmatprep.subr.mxu0 0.0
    %175 = vmatpush1.xpose.msra.mxu0 0.0
    %176 = vmatprep.subr.mxu0 0.0
    %177 = vmatpush1.xpose.msra.mxu0 0.0
    %178 = vmatprep.subr.mxu0 0.0
    %179 = vmatpush1.xpose.msra.mxu0 0.0
    %180 = vmatprep.subr.mxu0 0.0
    %181 = vmatpush1.xpose.msra.mxu0 0.0
    %182 = vmatprep.subr.mxu0 0.0
    %183 = vmatpush1.xpose.msra.mxu0 0.0
    %184 = vmatprep.subr.mxu0 0.0
    %185 = vmatpush1.xpose.msra.mxu0 0.0
    %186 = vmatprep.subr.mxu0 0.0
    %187 = vmatpush1.xpose.msra.mxu0 0.0
    %188 = vmatprep.subr.mxu0 0.0
    %189 = vmatpush1.xpose.msra.mxu0 0.0
    %190 = vmatprep.subr.mxu0 0.0
    %191 = vmatpush1.xpose.msra.mxu0 0.0
    %192 = vmatprep.mubr.f32.mxu0 0.0
    %193 = vmatmul.mubr.f32.gmra.mrb[0].mxu0 %v126
    %v194 = vpop.f32.mrb[0].mxu0
    %v195 = vadd.f32 0.0, %v194
    %v196 = vpop.f32.mrb[0].mxu0
    %197 = vdwg.mxu0
    %v198 = vld [vmem:[%s4] sm:$0x1]
    %vm199 = vcmask 130048
    %v201 = vsel %vm199, %v198, 0
    %v204 = vsel %vm199, %v24, 0
    %v207 = vsel %vm199, %v25, 0
    %v210 = vsel %vm199, %v26, 0
    %212 = vmatprep.subr.mxu0 0.0
    %213 = vmatpush1.xpose.msra.mxu0 %v204
    %214 = vmatprep.subr.mxu0 0.0
    %215 = vmatpush1.xpose.msra.mxu0 %v207
    %216 = vmatprep.subr.mxu0 0.0
    %217 = vmatpush1.xpose.msra.mxu0 %v210
    %218 = vmatprep.subr.mxu0 0.0
    %219 = vmatpush1.xpose.msra.mxu0 0.0
    %220 = vmatprep.subr.mxu0 0.0
    %221 = vmatpush1.xpose.msra.mxu0 0.0
    %222 = vmatprep.subr.mxu0 0.0
    %223 = vmatpush1.xpose.msra.mxu0 0.0
    %224 = vmatprep.subr.mxu0 0.0
    %225 = vmatpush1.xpose.msra.mxu0 0.0
    %226 = vmatprep.subr.mxu0 0.0
    %227 = vmatpush1.xpose.msra.mxu0 0.0
    %228 = vmatprep.subr.mxu0 0.0
    %229 = vmatpush1.xpose.msra.mxu0 0.0
    %230 = vmatprep.subr.mxu0 0.0
    %231 = vmatpush1.xpose.msra.mxu0 0.0
    %232 = vmatprep.subr.mxu0 0.0
    %233 = vmatpush1.xpose.msra.mxu0 0.0
    %234 = vmatprep.subr.mxu0 0.0
    %235 = vmatpush1.xpose.msra.mxu0 0.0
    %236 = vmatprep.subr.mxu0 0.0
    %237 = vmatpush1.xpose.msra.mxu0 0.0
    %238 = vmatprep.subr.mxu0 0.0
    %239 = vmatpush1.xpose.msra.mxu0 0.0
    %240 = vmatprep.subr.mxu0 0.0
    %241 = vmatpush1.xpose.msra.mxu0 0.0
    %242 = vmatprep.subr.mxu0 0.0
    %243 = vmatpush1.xpose.msra.mxu0 0.0
    %244 = vmatprep.subr.mxu0 0.0
    %245 = vmatpush1.xpose.msra.mxu0 0.0
    %246 = vmatprep.subr.mxu0 0.0
    %247 = vmatpush1.xpose.msra.mxu0 0.0
    %248 = vmatprep.subr.mxu0 0.0
    %249 = vmatpush1.xpose.msra.mxu0 0.0
    %250 = vmatprep.subr.mxu0 0.0
    %251 = vmatpush1.xpose.msra.mxu0 0.0
    %252 = vmatprep.subr.mxu0 0.0
    %253 = vmatpush1.xpose.msra.mxu0 0.0
    %254 = vmatprep.subr.mxu0 0.0
    %255 = vmatpush1.xpose.msra.mxu0 0.0
    %256 = vmatprep.subr.mxu0 0.0
    %257 = vmatpush1.xpose.msra.mxu0 0.0
    %258 = vmatprep.subr.mxu0 0.0
    %259 = vmatpush1.xpose.msra.mxu0 0.0
    %260 = vmatprep.subr.mxu0 0.0
    %261 = vmatpush1.xpose.msra.mxu0 0.0
    %262 = vmatprep.subr.mxu0 0.0
    %263 = vmatpush1.xpose.msra.mxu0 0.0
    %264 = vmatprep.subr.mxu0 0.0
    %265 = vmatpush1.xpose.msra.mxu0 0.0
    %266 = vmatprep.subr.mxu0 0.0
    %267 = vmatpush1.xpose.msra.mxu0 0.0
    %268 = vmatprep.subr.mxu0 0.0
    %269 = vmatpush1.xpose.msra.mxu0 0.0
    %270 = vmatprep.subr.mxu0 0.0
    %271 = vmatpush1.xpose.msra.mxu0 0.0
    %272 = vmatprep.subr.mxu0 0.0
    %273 = vmatpush1.xpose.msra.mxu0 0.0
    %274 = vmatprep.subr.mxu0 0.0
    %275 = vmatpush1.xpose.msra.mxu0 0.0
    %276 = vmatprep.mubr.f32.mxu0 0.0
    %277 = vmatmul.mubr.f32.gmra.mrb[0].mxu0 %v201
    %v278 = vpop.f32.mrb[0].mxu0
    %v279 = vadd.f32 0.0, %v278
    %v280 = vpop.f32.mrb[0].mxu0
    %281 = vdwg.mxu0
    %v283 = vsel %vm199, 1.0, 0
    %v286 = vsel %vm199, %v121, 0
    %v289 = vsel %vm199, %v122, 0
    %v292 = vsel %vm199, %v123, 0
    %294 = vmatprep.subr.mxu0 0.0
    %295 = vmatpush1.xpose.msra.mxu0 %v286
    %296 = vmatprep.subr.mxu0 0.0
    %297 = vmatpush1.xpose.msra.mxu0 %v289
    %298 = vmatprep.subr.mxu0 0.0
    %299 = vmatpush1.xpose.msra.mxu0 %v292
    %300 = vmatprep.subr.mxu0 0.0
    %301 = vmatpush1.xpose.msra.mxu0 0.0
    %302 = vmatprep.subr.mxu0 0.0
    %303 = vmatpush1.xpose.msra.mxu0 0.0
    %304 = vmatprep.subr.mxu0 0.0
    %305 = vmatpush1.xpose.msra.mxu0 0.0
    %306 = vmatprep.subr.mxu0 0.0
    %307 = vmatpush1.xpose.msra.mxu0 0.0
    %308 = vmatprep.subr.mxu0 0.0
    %309 = vmatpush1.xpose.msra.mxu0 0.0
    %310 = vmatprep.subr.mxu0 0.0
    %311 = vmatpush1.xpose.msra.mxu0 0.0
    %312 = vmatprep.subr.mxu0 0.0
    %313 = vmatpush1.xpose.msra.mxu0 0.0
    %314 = vmatprep.subr.mxu0 0.0
    %315 = vmatpush1.xpose.msra.mxu0 0.0
    %316 = vmatprep.subr.mxu0 0.0
    %317 = vmatpush1.xpose.msra.mxu0 0.0
    %318 = vmatprep.subr.mxu0 0.0
    %319 = vmatpush1.xpose.msra.mxu0 0.0
    %320 = vmatprep.subr.mxu0 0.0
    %321 = vmatpush1.xpose.msra.mxu0 0.0
    %322 = vmatprep.subr.mxu0 0.0
    %323 = vmatpush1.xpose.msra.mxu0 0.0
    %324 = vmatprep.subr.mxu0 0.0
    %325 = vmatpush1.xpose.msra.mxu0 0.0
    %326 = vmatprep.subr.mxu0 0.0
    %327 = vmatpush1.xpose.msra.mxu0 0.0
    %328 = vmatprep.subr.mxu0 0.0
    %329 = vmatpush1.xpose.msra.mxu0 0.0
    %330 = vmatprep.subr.mxu0 0.0
    %331 = vmatpush1.xpose.msra.mxu0 0.0
    %332 = vmatprep.subr.mxu0 0.0
    %333 = vmatpush1.xpose.msra.mxu0 0.0
    %334 = vmatprep.subr.mxu0 0.0
    %335 = vmatpush1.xpose.msra.mxu0 0.0
    %336 = vmatprep.subr.mxu0 0.0
    %337 = vmatpush1.xpose.msra.mxu0 0.0
    %338 = vmatprep.subr.mxu0 0.0
    %339 = vmatpush1.xpose.msra.mxu0 0.0
    %340 = vmatprep.subr.mxu0 0.0
    %341 = vmatpush1.xpose.msra.mxu0 0.0
    %342 = vmatprep.subr.mxu0 0.0
    %343 = vmatpush1.xpose.msra.mxu0 0.0
    %344 = vmatprep.subr.mxu0 0.0
    %345 = vmatpush1.xpose.msra.mxu0 0.0
    %346 = vmatprep.subr.mxu0 0.0
    %347 = vmatpush1.xpose.msra.mxu0 0.0
    %348 = vmatprep.subr.mxu0 0.0
    %349 = vmatpush1.xpose.msra.mxu0 0.0
    %350 = vmatprep.subr.mxu0 0.0
    %351 = vmatpush1.xpose.msra.mxu0 0.0
    %352 = vmatprep.subr.mxu0 0.0
    %353 = vmatpush1.xpose.msra.mxu0 0.0
    %354 = vmatprep.subr.mxu0 0.0
    %355 = vmatpush1.xpose.msra.mxu0 0.0
    %356 = vmatprep.subr.mxu0 0.0
    %357 = vmatpush1.xpose.msra.mxu0 0.0
    %358 = vmatprep.mubr.f32.mxu0 0.0
    %359 = vmatmul.mubr.f32.gmra.mrb[0].mxu0 %v283
    %v360 = vpop.f32.mrb[0].mxu0
    %v361 = vadd.f32 %v195, %v360
    %v362 = vpop.f32.mrb[0].mxu0
    %363 = vdwg.mxu0
    %v364 = vadd.f32 %v361, %v279
    %vm365 = vcmask 188416
    %366 = vst.msk [vmem:[#allocation2] sm:$0x1] %vm365, %v364
    // Predicated region
    $region22: #{tpu_custom_call.1} parent=1 // pred_check
      _
    $region23: #{tpu_custom_call.1} parent=1 // pred_check_branch
      %368 = sbr.rel (0) target = $region25
    $region24: #{tpu_custom_call.1} parent=1 // pred_region
      %s370 = ssub.s32 16, 16
      %371 = vsyncadd [#allocation3], %s370
      %s373 = sshll.u32 [#allocation2], 4
      %s374 = int_to_ptr.vmem [resolvable:$true] %s373
      %376 = dma.vmem_to_hbm [thread:$0]  %s374, 16, %s5, [#allocation3]
    $region25: #{tpu_custom_call.1} parent=1 // pred_fallthru
      _
    // Predicated region
    $region26: #{tpu_custom_call.1} parent=1 // pred_check
      _
    $region27: #{tpu_custom_call.1} parent=1 // pred_check_branch
      %378 = sbr.rel (0) target = $region29
    $region28: #{tpu_custom_call.1} parent=1 // pred_region
      %379 = dma.done [#allocation3], 16
    $region29: #{tpu_custom_call.1} parent=1 // pred_fallthru
      _
    %380 = vsyncpa [#allocation3], 1

</llo_original>
